<compile_context>
chip_gen: v6e
topology: v6e:2x2x1
jax: 0.10.0
libtpu: 0.0.40
codegen_flags: <defaults>
</compile_context>

<pallas_src>
from functools import partial

import jax
import jax.numpy as jnp
from jax import lax
from jax.experimental import pallas as pl
from jax.experimental.pallas import tpu as pltpu

LANE = 128            # vreg lane width
BLOCK_ROWS = 4096     # max sublane rows per grid step (4096*128*4B = 2 MiB f32)
ACC_ROWS_MAX = 128    # fixed-size vector accumulator rows (64 KiB f32)


def _num_tensorcores():
    """Best-effort TensorCore count (2 on v7x megacore); safe fallback = 2."""
    try:
        info = pltpu.get_tpu_info()
        for attr in ("num_cores", "core_count", "num_tensorcores",
                     "tensor_core_count"):
            v = getattr(info, attr, None)
            if v:
                return max(1, min(int(v), 8))
    except Exception:
        pass
    return 2


def _dice_kernel(x_ref, t_ref, out_ref, acc_xt_ref, acc_s_ref, *,
                 block_rows, acc_rows, blocks_per_slice, valid_rows,
                 needs_mask):
    """Accumulate elementwise partial sums; one cross-lane reduce per slice.

    x_ref/t_ref : (block_rows, LANE) VMEM tiles (native dtype, upcast here)
    out_ref     : (1, 8, LANE) VMEM per-slice partials
                  [0, 0, 0] = sum(x*t), [0, 1, 0] = sum(x) + sum(t)
    acc_*_ref   : (acc_rows, LANE) f32 VMEM vector accumulators
    """
    i = pl.program_id(0)   # slice index ("parallel" -> a TensorCore on v7x)
    j = pl.program_id(1)   # row-block within the slice (reduction axis)

    @pl.when(j == 0)
    def _():
        acc_xt_ref[...] = jnp.zeros_like(acc_xt_ref)
        acc_s_ref[...] = jnp.zeros_like(acc_s_ref)

    row0 = (i * blocks_per_slice + j) * block_rows   # unclamped global row

    def _accum(mask_rows):
        # Upcast in-kernel (VPU, hidden under the HBM stream).
        x = x_ref[...].astype(jnp.float32)
        t = t_ref[...].astype(jnp.float32)
        if mask_rows:
            local_row = lax.broadcasted_iota(jnp.int32, x.shape, 0)
            valid = (row0 + local_row) < valid_rows
            x = jnp.where(valid, x, 0.0)
            t = jnp.where(valid, t, 0.0)
        prod = x * t
        tot = x + t
        if block_rows == acc_rows:
            acc_xt_ref[...] += prod
            acc_s_ref[...] += tot
        else:
            # Layout-free reshape (acc_rows divides block_rows, both mult of 8);
            # the leading-axis sum is pure VALU (no XLU).
            acc_xt_ref[...] += jnp.sum(prod.reshape(-1, acc_rows, LANE), axis=0)
            acc_s_ref[...] += jnp.sum(tot.reshape(-1, acc_rows, LANE), axis=0)

    if needs_mask:
        is_full = (row0 + block_rows) <= valid_rows

        @pl.when(is_full)
        def _():                       # hot path: no mask at all
            _accum(False)

        @pl.when(jnp.logical_and(row0 < valid_rows, jnp.logical_not(is_full)))
        def _():                       # single partial block pays the mask
            _accum(True)
        # row0 >= valid_rows: clamped overhang block -> skip all VPU work.
    else:
        _accum(False)

    @pl.when(j == pl.num_programs(1) - 1)
    def _():
        inter = jnp.sum(acc_xt_ref[...])     # single XLU reduce per slice
        ssum = jnp.sum(acc_s_ref[...])
        sub = lax.broadcasted_iota(jnp.int32, out_ref.shape, 1)
        out_ref[...] = jnp.where(sub == 0, inter,
                                 jnp.where(sub == 1, ssum, 0.0))


def dice_loss(inputs, targets, smooth=0.01):
    """Pallas equivalent of DiceLoss.forward(inputs, targets, smooth)."""
    x = jnp.reshape(inputs, (-1,))     # free bitcast; keep native dtype
    t = jnp.reshape(targets, (-1,))
    n = x.shape[0]
    n_main = (n // LANE) * LANE
    rows = n_main // LANE

    # Trailing n % 128 elements: tiny plain-jnp reduction (no full-array pad).
    if n_main != n:
        xt = x[n_main:].astype(jnp.float32)
        tt = t[n_main:].astype(jnp.float32)
        tail_inter = jnp.sum(xt * tt)
        tail_total = jnp.sum(xt) + jnp.sum(tt)
    else:
        tail_inter = jnp.zeros((), jnp.float32)
        tail_total = jnp.zeros((), jnp.float32)

    if rows == 0:
        intersection, total = tail_inter, tail_total
    else:
        x_main = x if n_main == n else x[:n_main]
        t_main = t if n_main == n else t[:n_main]
        x2 = x_main.reshape(rows, LANE)
        t2 = t_main.reshape(rows, LANE)

        # Sublane multiple required by the narrowest dtype (f32->8, bf16->16, i8->32).
        min_itemsize = min(x2.dtype.itemsize, t2.dtype.itemsize)
        sub_mult = max(8, 32 // int(min_itemsize))

        if rows >= sub_mult:
            br = min(BLOCK_ROWS, (rows // sub_mult) * sub_mult)
        else:
            br = rows                    # block == full array dim (always legal)

        if br % ACC_ROWS_MAX == 0:
            acc_rows = ACC_ROWS_MAX
        elif br % 8 == 0:
            acc_rows = 8
        else:
            acc_rows = br                # tiny arrays: accumulate directly

        nblocks = pl.cdiv(rows, br)
        ncores = _num_tensorcores()
        nslices = ncores if (ncores > 1 and nblocks >= ncores) else 1
        bps = pl.cdiv(nblocks, nslices)          # row-blocks per slice
        needs_mask = (nslices * bps * br) != rows

        def in_map(i, j):
            # Clamp so a tail slice's overhang never indexes past the array;
            # the kernel skips accumulation for those duplicate reads.
            return (jnp.minimum(i * bps + j, nblocks - 1), 0)

        kernel = partial(_dice_kernel, block_rows=br, acc_rows=acc_rows,
                         blocks_per_slice=bps, valid_rows=rows,
                         needs_mask=needs_mask)

        cost = pl.CostEstimate(
            flops=4 * rows * LANE,
            transcendentals=0,
            bytes_accessed=rows * LANE * (int(x2.dtype.itemsize)
                                          + int(t2.dtype.itemsize))
                           + nslices * 8 * LANE * 4,
        )

        partials = pl.pallas_call(
            kernel,
            out_shape=jax.ShapeDtypeStruct((nslices, 8, LANE), jnp.float32),
            grid_spec=pltpu.PrefetchScalarGridSpec(
                num_scalar_prefetch=0,
                grid=(nslices, bps),
                in_specs=[
                    pl.BlockSpec((br, LANE), in_map),
                    pl.BlockSpec((br, LANE), in_map),
                ],
                out_specs=pl.BlockSpec((1, 8, LANE), lambda i, j: (i, 0, 0)),
                scratch_shapes=[
                    pltpu.VMEM((acc_rows, LANE), jnp.float32),
                    pltpu.VMEM((acc_rows, LANE), jnp.float32),
                ],
            ),
            compiler_params=pltpu.CompilerParams(
                dimension_semantics=("parallel", "arbitrary"),
            ),
            cost_estimate=cost,
        )(x2, t2)

        intersection = jnp.sum(partials[:, 0, 0]) + tail_inter
        total = jnp.sum(partials[:, 1, 0]) + tail_total   # sum(x) + sum(t)

    dice = (2.0 * intersection + smooth) / (total + smooth)
    return 1.0 - dice


def _dice_loss_ref(inputs, targets, smooth=0.01):
    x = jnp.reshape(inputs, (-1,)).astype(jnp.float32)
    t = jnp.reshape(targets, (-1,)).astype(jnp.float32)
    inter = jnp.sum(x * t)
    dice = (2.0 * inter + smooth) / (jnp.sum(x) + jnp.sum(t) + smooth)
    return 1.0 - dice


if __name__ == "__main__":
    key = jax.random.PRNGKey(0)
    k1, k2, k3, k4, k5, k6, k7, k8 = jax.random.split(key, 8)

    # 1) NCHW sigmoid probabilities vs binary targets (lane-aligned, one block).
    x1 = jax.nn.sigmoid(jax.random.normal(k1, (2, 4, 16, 16), dtype=jnp.float32))
    y1 = (jax.random.uniform(k2, (2, 4, 16, 16)) > 0.5).astype(jnp.float32)
    loss1 = jax.block_until_ready(dice_loss(x1, y1, smooth=0.01))
    ref1 = _dice_loss_ref(x1, y1, smooth=0.01)
    assert jnp.allclose(loss1, ref1, atol=1e-5, rtol=1e-5), (loss1, ref1)

    # 2) Shape exercising the multi-slice grid + gated partial-block masking.
    x2 = jax.nn.sigmoid(jax.random.normal(k3, (2, 4, 16, 20), dtype=jnp.float32))
    y2 = (jax.random.uniform(k4, (2, 4, 16, 20)) > 0.5).astype(jnp.float32)
    loss2 = jax.block_until_ready(dice_loss(x2, y2, smooth=0.01))
    ref2 = _dice_loss_ref(x2, y2, smooth=0.01)
    assert jnp.allclose(loss2, ref2, atol=1e-5, rtol=1e-5), (loss2, ref2)

    # 3) Non-lane-aligned size + bf16 inputs (wrapper tail path, no pad copy).
    x3 = jax.nn.sigmoid(jax.random.normal(k5, (2, 3, 17, 19))).astype(jnp.bfloat16)
    y3 = (jax.random.uniform(k6, (2, 3, 17, 19)) > 0.5).astype(jnp.float32)
    loss3 = jax.block_until_ready(dice_loss(x3, y3, smooth=0.01))
    ref3 = _dice_loss_ref(x3, y3, smooth=0.01)
    assert jnp.allclose(loss3, ref3, atol=1e-5, rtol=1e-5), (loss3, ref3)

    # 4) Moderate segmentation-mask shape exercising the 4096-row block path:
    #    full blocks, one partial block, and a clamped overhang block (skipped).
    x4 = jax.nn.sigmoid(jax.random.normal(k7, (2, 4, 384, 384), dtype=jnp.float32))
    y4 = (jax.random.uniform(k8, (2, 4, 384, 384)) > 0.5).astype(jnp.float32)
    loss4 = jax.block_until_ready(dice_loss(x4, y4, smooth=0.01))
    ref4 = _dice_loss_ref(x4, y4, smooth=0.01)
    assert jnp.allclose(loss4, ref4, atol=1e-4, rtol=1e-4), (loss4, ref4)

    print("KERNEL_OK")
</pallas_src>

<mosaic_0001>
module attributes {stable_mosaic.version = 11 : i64} {
  func.func @_dice_kernel(%arg0: i32, %arg1: i32, %arg2: memref<16x128xf32, #tpu.memory_space<vmem>>, %arg3: memref<16x128xf32, #tpu.memory_space<vmem>>, %arg4: memref<1x8x128xf32, #tpu.memory_space<vmem>>, %arg5: memref<8x128xf32, #tpu.memory_space<vmem>>, %arg6: memref<8x128xf32, #tpu.memory_space<vmem>>) attributes {dimension_semantics = [#tpu.dimension_semantics<parallel>, #tpu.dimension_semantics<arbitrary>], iteration_bounds = array<i64: 1, 1>, scalar_prefetch = 0 : i64, scratch_operands = 2 : i64, tpu.core_type = #tpu.core_type<tc>, window_params = [{transform_indices = @transform_0, window_bounds = array<i64: 16, 128>}, {transform_indices = @transform_1, window_bounds = array<i64: 16, 128>}, {transform_indices = @transform_2, window_bounds = array<i64: 1, 8, 128>}]} {
    %c0_i32 = arith.constant 0 : i32
    %0 = arith.cmpi eq, %arg1, %c0_i32 : i32
    %1 = arith.extui %0 : i1 to i32
    %c0_i32_0 = arith.constant 0 : i32
    %2 = arith.cmpi ne, %1, %c0_i32_0 : i32
    scf.if %2 {
      %cst_15 = arith.constant 0.000000e+00 : f32
      %20 = vector.broadcast %cst_15 : f32 to vector<8x128xf32>
      %c0_16 = arith.constant 0 : index
      %c0_17 = arith.constant 0 : index
      %21 = vector.load %arg5[%c0_16, %c0_17] : memref<8x128xf32, #tpu.memory_space<vmem>>, vector<8x128xf32>
      tpu.vector_store %arg5[%c0_16, %c0_17], %20 {strides = array<i32>} : memref<8x128xf32, #tpu.memory_space<vmem>>, vector<8x128xf32>,
      %cst_18 = arith.constant 0.000000e+00 : f32
      %22 = vector.broadcast %cst_18 : f32 to vector<8x128xf32>
      %c0_19 = arith.constant 0 : index
      %c0_20 = arith.constant 0 : index
      %23 = vector.load %arg6[%c0_19, %c0_20] : memref<8x128xf32, #tpu.memory_space<vmem>>, vector<8x128xf32>
      tpu.vector_store %arg6[%c0_19, %c0_20], %22 {strides = array<i32>} : memref<8x128xf32, #tpu.memory_space<vmem>>, vector<8x128xf32>,
    } else {
    }
    %c0 = arith.constant 0 : index
    %c0_1 = arith.constant 0 : index
    %3 = vector.load %arg2[%c0, %c0_1] : memref<16x128xf32, #tpu.memory_space<vmem>>, vector<16x128xf32>
    %c0_2 = arith.constant 0 : index
    %c0_3 = arith.constant 0 : index
    %4 = vector.load %arg3[%c0_2, %c0_3] : memref<16x128xf32, #tpu.memory_space<vmem>>, vector<16x128xf32>
    %5 = arith.mulf %3, %4 : vector<16x128xf32>
    %6 = arith.addf %3, %4 : vector<16x128xf32>
    %c0_4 = arith.constant 0 : index
    %c0_5 = arith.constant 0 : index
    %7 = vector.load %arg5[%c0_4, %c0_5] : memref<8x128xf32, #tpu.memory_space<vmem>>, vector<8x128xf32>
    %8 = vector.shape_cast %5 : vector<16x128xf32> to vector<2x8x128xf32>
    %cst = arith.constant dense<0.000000e+00> : vector<8x128xf32>
    %9 = vector.multi_reduction <add>, %8, %cst [0] : vector<2x8x128xf32> to vector<8x128xf32>
    %10 = arith.addf %7, %9 : vector<8x128xf32>
    %c0_6 = arith.constant 0 : index
    %c0_7 = arith.constant 0 : index
    %11 = vector.load %arg5[%c0_6, %c0_7] : memref<8x128xf32, #tpu.memory_space<vmem>>, vector<8x128xf32>
    tpu.vector_store %arg5[%c0_6, %c0_7], %10 {strides = array<i32>} : memref<8x128xf32, #tpu.memory_space<vmem>>, vector<8x128xf32>,
    %c0_8 = arith.constant 0 : index
    %c0_9 = arith.constant 0 : index
    %12 = vector.load %arg6[%c0_8, %c0_9] : memref<8x128xf32, #tpu.memory_space<vmem>>, vector<8x128xf32>
    %13 = vector.shape_cast %6 : vector<16x128xf32> to vector<2x8x128xf32>
    %cst_10 = arith.constant dense<0.000000e+00> : vector<8x128xf32>
    %14 = vector.multi_reduction <add>, %13, %cst_10 [0] : vector<2x8x128xf32> to vector<8x128xf32>
    %15 = arith.addf %12, %14 : vector<8x128xf32>
    %c0_11 = arith.constant 0 : index
    %c0_12 = arith.constant 0 : index
    %16 = vector.load %arg6[%c0_11, %c0_12] : memref<8x128xf32, #tpu.memory_space<vmem>>, vector<8x128xf32>
    tpu.vector_store %arg6[%c0_11, %c0_12], %15 {strides = array<i32>} : memref<8x128xf32, #tpu.memory_space<vmem>>, vector<8x128xf32>,
    %c0_i32_13 = arith.constant 0 : i32
    %17 = arith.cmpi eq, %arg1, %c0_i32_13 : i32
    %18 = arith.extui %17 : i1 to i32
    %c0_i32_14 = arith.constant 0 : i32
    %19 = arith.cmpi ne, %18, %c0_i32_14 : i32
    scf.if %19 {
      %c0_15 = arith.constant 0 : index
      %c0_16 = arith.constant 0 : index
      %20 = vector.load %arg5[%c0_15, %c0_16] : memref<8x128xf32, #tpu.memory_space<vmem>>, vector<8x128xf32>
      %21 = vector.shape_cast %20 : vector<8x128xf32> to vector<1x8x128xf32>
      %cst_17 = arith.constant dense<0.000000e+00> : vector<1xf32>
      %22 = vector.multi_reduction <add>, %21, %cst_17 [1, 2] : vector<1x8x128xf32> to vector<1xf32>
      %23 = vector.shape_cast %22 : vector<1xf32> to vector<1x1x1xf32>
      %24 = vector.extract %23[0, 0, 0] : f32 from vector<1x1x1xf32>
      %c0_18 = arith.constant 0 : index
      %c0_19 = arith.constant 0 : index
      %25 = vector.load %arg6[%c0_18, %c0_19] : memref<8x128xf32, #tpu.memory_space<vmem>>, vector<8x128xf32>
      %26 = vector.shape_cast %25 : vector<8x128xf32> to vector<1x8x128xf32>
      %cst_20 = arith.constant dense<0.000000e+00> : vector<1xf32>
      %27 = vector.multi_reduction <add>, %26, %cst_20 [1, 2] : vector<1x8x128xf32> to vector<1xf32>
      %28 = vector.shape_cast %27 : vector<1xf32> to vector<1x1x1xf32>
      %29 = vector.extract %28[0, 0, 0] : f32 from vector<1x1x1xf32>
      %30 = tpu.iota {dimensions = array<i32: 1>} : vector<1x8x128xi32>
      %c0_i32_21 = arith.constant 0 : i32
      %31 = vector.broadcast %c0_i32_21 : i32 to vector<1x8x128xi32>
      %32 = arith.cmpi eq, %30, %31 : vector<1x8x128xi32>
      %c1_i32 = arith.constant 1 : i32
      %33 = vector.broadcast %c1_i32 : i32 to vector<1x8x128xi32>
      %34 = arith.cmpi eq, %30, %33 : vector<1x8x128xi32>
      %cst_22 = arith.constant 0.000000e+00 : f32
      %35 = vector.broadcast %29 : f32 to vector<1x8x128xf32>
      %36 = vector.broadcast %cst_22 : f32 to vector<1x8x128xf32>
      %37 = arith.select %34, %35, %36 : vector<1x8x128xi1>, vector<1x8x128xf32>
      %38 = vector.broadcast %24 : f32 to vector<1x8x128xf32>
      %39 = arith.select %32, %38, %37 : vector<1x8x128xi1>, vector<1x8x128xf32>
      %c0_23 = arith.constant 0 : index
      %c0_24 = arith.constant 0 : index
      %c0_25 = arith.constant 0 : index
      %40 = vector.load %arg4[%c0_23, %c0_24, %c0_25] : memref<1x8x128xf32, #tpu.memory_space<vmem>>, vector<1x8x128xf32>
      tpu.vector_store %arg4[%c0_23, %c0_24, %c0_25], %39 {strides = array<i32>} : memref<1x8x128xf32, #tpu.memory_space<vmem>>, vector<1x8x128xf32>,
    } else {
    }
    return
  }
  func.func @transform_0(%arg0: i32, %arg1: i32) -> (i32, i32) {
    %c1_i32 = arith.constant 1 : i32
    %0 = arith.muli %arg0, %c1_i32 : i32
    %1 = arith.addi %0, %arg1 : i32
    %c0_i32 = arith.constant 0 : i32
    %2 = arith.minsi %1, %c0_i32 : i32
    %c0_i32_0 = arith.constant 0 : i32
    %c0_i32_1 = arith.constant 0 : i32
    return %2, %c0_i32_0 : i32, i32
  }
  func.func @transform_1(%arg0: i32, %arg1: i32) -> (i32, i32) {
    %c1_i32 = arith.constant 1 : i32
    %0 = arith.muli %arg0, %c1_i32 : i32
    %1 = arith.addi %0, %arg1 : i32
    %c0_i32 = arith.constant 0 : i32
    %2 = arith.minsi %1, %c0_i32 : i32
    %c0_i32_0 = arith.constant 0 : i32
    %c0_i32_1 = arith.constant 0 : i32
    return %2, %c0_i32_0 : i32, i32
  }
  func.func @transform_2(%arg0: i32, %arg1: i32) -> (i32, i32, i32) {
    %c0_i32 = arith.constant 0 : i32
    %c0_i32_0 = arith.constant 0 : i32
    %c0_i32_1 = arith.constant 0 : i32
    return %arg0, %c0_i32, %c0_i32_0 : i32, i32, i32
  }
}

</mosaic_0001>

<llo_original>
// kernel: tpu_custom_call.1
$region0: #{tpu_custom_call.1}
  #allocation0 [shape = 'u32[]', space=smem, size = 0x4, offset = 0x4, fixed_abs, tag = 'smem constant byte address 0x4 - core index']
  #allocation1 [shape = 'u32[144,128]{1,0:T(1,128)}', space=vmem, size = 0x12000, scoped, tag = 'internal scratch']
  #allocation2 [shape = 'f32[8,128]{1,0:T(8,128)}', space=vmem, size = 0x1000, scoped, tag = 'scratch operand']
  #allocation3 [shape = 'f32[8,128]{1,0:T(8,128)}', space=vmem, size = 0x1000, scoped, tag = 'scratch operand']
  %s0 = inlined_call_operand.hbm [shape: f32[16,128], index: 0, kind: input, shape index: {}]
  %s1 = inlined_call_operand.hbm [shape: f32[16,128], index: 1, kind: input, shape index: {}]
  %s2 = inlined_call_operand.hbm [shape: f32[1,8,128], index: 2, kind: output, shape index: {}]
  %s3 = sld [smem:[#allocation0]]
  $region34: #{tpu_custom_call.1} parent=0
    _
  %s5 = ssub.s32 1, %s3
  %s6 = scalar_select 0, %s5, %s3
  $region1: #{tpu_custom_call.1} parent=0
    #allocation4 [shape = 'u8[8192]{0}', space=vmem, size = 0x2000, scoped, tag = 'input window, operand 0, single buffered']
    #allocation5 [shape = 's32[1]{0}', space=sflag, size = 0x4, scoped, tag = 'scoped memory for tpu_custom_call.1']
    #allocation6 [shape = 's32[1]{0}', space=sflag, size = 0x4, scoped, tag = 'scoped memory for tpu_custom_call.1']
    #allocation7 [shape = 'u8[8192]{0}', space=vmem, size = 0x2000, scoped, tag = 'input window, operand 1, single buffered']
    #allocation8 [shape = 's32[1]{0}', space=sflag, size = 0x4, scoped, tag = 'scoped memory for tpu_custom_call.1']
    #allocation9 [shape = 'u8[4096]{0}', space=vmem, size = 0x1000, scoped, tag = 'output window, operand 0, single buffered']
    %7 = vsyncpa [#allocation5], 0
    %8 = vsyncpa [#allocation8], 0
    %9 = vsyncpa [#allocation6], 0
    // Predicated region
    $region2: #{tpu_custom_call.1} parent=1 // pred_check
      _
    $region3: #{tpu_custom_call.1} parent=1 // pred_check_branch
      %11 = sbr.rel (0) target = $region5
    $region4: #{tpu_custom_call.1} parent=1 // pred_region
      %s12 = sadd.s32 0, 0
      %p13 = scmp.lt.s32.totalorder %s12, 0
      %s14 = scalar_select %p13, %s12, 0
      %s15 = smul.u32 2, %s14
      %s17 = ssub.s32 256, 256
      %18 = vsyncadd [#allocation5], %s17
      %s19 = smul.addr %s15, 128
      %s20 = scalar_lea.hbm %s0, %s19
      %s21 = sshll.u32 [#allocation4], 4
      %s22 = int_to_ptr.vmem [resolvable:$true] %s21
      %27 = dma.hbm_to_vmem [thread:$0]  %s20, 256, %s22, [#allocation5], 128, 128, 8
    $region5: #{tpu_custom_call.1} parent=1 // pred_fallthru
      _
    // Predicated region
    $region6: #{tpu_custom_call.1} parent=1 // pred_check
      _
    $region7: #{tpu_custom_call.1} parent=1 // pred_check_branch
      %29 = sbr.rel (0) target = $region9
    $region8: #{tpu_custom_call.1} parent=1 // pred_region
      %s30 = sadd.s32 0, 0
      %p31 = scmp.lt.s32.totalorder %s30, 0
      %s32 = scalar_select %p31, %s30, 0
      %s33 = smul.u32 2, %s32
      %s35 = ssub.s32 256, 256
      %36 = vsyncadd [#allocation8], %s35
      %s37 = smul.addr %s33, 128
      %s38 = scalar_lea.hbm %s1, %s37
      %s39 = sshll.u32 [#allocation7], 4
      %s40 = int_to_ptr.vmem [resolvable:$true] %s39
      %45 = dma.hbm_to_vmem [thread:$0]  %s38, 256, %s40, [#allocation8], 128, 128, 8
    $region9: #{tpu_custom_call.1} parent=1 // pred_fallthru
      _
    // Predicated region
    $region10: #{tpu_custom_call.1} parent=1 // pred_check
      _
    $region11: #{tpu_custom_call.1} parent=1 // pred_check_branch
      %47 = sbr.rel (0) target = $region13
    $region12: #{tpu_custom_call.1} parent=1 // pred_region
      %48 = dma.done [#allocation5], 256
    $region13: #{tpu_custom_call.1} parent=1 // pred_fallthru
      _
    // Predicated region
    $region14: #{tpu_custom_call.1} parent=1 // pred_check
      _
    $region15: #{tpu_custom_call.1} parent=1 // pred_check_branch
      %50 = sbr.rel (0) target = $region17
    $region16: #{tpu_custom_call.1} parent=1 // pred_region
      %51 = dma.done [#allocation8], 256
    $region17: #{tpu_custom_call.1} parent=1 // pred_fallthru
      _
    %s52 = sadd.s32 0, 0
    %p53 = scmp.lt.s32.totalorder %s52, 0
    %s54 = scalar_select %p53, %s52, 0
    %s55 = smul.u32 2, %s54
    %s56 = sadd.s32 0, 0
    %p57 = scmp.lt.s32.totalorder %s56, 0
    %s58 = scalar_select %p57, %s56, 0
    %s59 = smul.u32 2, %s58
    %p60 = scmp.eq.s32.totalorder 0, 0
    // Predicated region
    $region18: #{tpu_custom_call.1} parent=1 // pred_check
      %p61 = pneg %p60
    $region19: #{tpu_custom_call.1} parent=1 // pred_check_branch
      %63 = sbr.rel (%p61) target = $region21
    $region20: #{tpu_custom_call.1} parent=1 // pred_region
      %64 = vst [vmem:[#allocation2] sm:$0xff] 0.0
      %65 = vst [vmem:[#allocation3] sm:$0xff] 0.0
    $region21: #{tpu_custom_call.1} parent=1 // pred_fallthru
      _
    %v66 = vld [vmem:[#allocation4] sm:$0xff]
    %v67 = vld [vmem:[#allocation4 + $0x8] sm:$0xff]
    %v68 = vld [vmem:[#allocation7] sm:$0xff]
    %v69 = vld [vmem:[#allocation7 + $0x8] sm:$0xff]
    %v70 = vmul.f32 %v66, %v68
    %v71 = vmul.f32 %v67, %v69
    %v72 = vadd.f32 %v66, %v68
    %v73 = vadd.f32 %v67, %v69
    %v74 = vld [vmem:[#allocation2] sm:$0xff]
    %v75 = vadd.f32 %v70, %v71
    %v76 = vadd.f32 %v74, %v75
    %77 = vst [vmem:[#allocation2] sm:$0xff] %v76
    %v78 = vld [vmem:[#allocation3] sm:$0xff]
    %v79 = vadd.f32 %v72, %v73
    %v80 = vadd.f32 %v78, %v79
    %81 = vst [vmem:[#allocation3] sm:$0xff] %v80
    // Predicated region
    $region22: #{tpu_custom_call.1} parent=1 // pred_check
      %p82 = pneg %p60
    $region23: #{tpu_custom_call.1} parent=1 // pred_check_branch
      %84 = sbr.rel (%p82) target = $region25
    $region24: #{tpu_custom_call.1} parent=1 // pred_region
      %v85 = vld [vmem:[#allocation2] sm:$0xff]
      %86 = vadd.xlane.f32.xlu0 %v85
      %v87 = vpop.xlane.xlu0 %86
      %v88 = vrot.slane %v87, 4
      %v89 = vadd.f32 %v87, %v88
      %v90 = vrot.slane %v89, 2
      %v91 = vadd.f32 %v89, %v90
      %v92 = vrot.slane %v91, 1
      %v93 = vadd.f32 %v91, %v92
      %s94 = vtos %v93
      %v95 = vld [vmem:[#allocation3] sm:$0xff]
      %96 = vadd.xlane.f32.xlu0 %v95
      %v97 = vpop.xlane.xlu0 %96
      %v98 = vrot.slane %v97, 4
      %v99 = vadd.f32 %v97, %v98
      %v100 = vrot.slane %v99, 2
      %v101 = vadd.f32 %v99, %v100
      %v102 = vrot.slane %v101, 1
      %v103 = vadd.f32 %v101, %v102
      %s104 = vtos %v103
      %v105 = vlaneseq
      %v106 = vshrl.u32 %v105, 7
      %vm107 = vcmp.eq.s32.totalorder %v106, 0
      %vm108 = vcmp.eq.s32.totalorder %v106, 1
      %v109 = vstv %s104
      %v110 = vsel %vm108, %v109, 0.0
      %v111 = vstv %s94
      %v112 = vsel %vm107, %v111, %v110
      %113 = vst [vmem:[#allocation9] sm:$0xff] %v112
    $region25: #{tpu_custom_call.1} parent=1 // pred_fallthru
      _
    // Predicated region
    $region26: #{tpu_custom_call.1} parent=1 // pred_check
      _
    $region27: #{tpu_custom_call.1} parent=1 // pred_check_branch
      %115 = sbr.rel (0) target = $region29
    $region28: #{tpu_custom_call.1} parent=1 // pred_region
      %s117 = ssub.s32 128, 128
      %118 = vsyncadd [#allocation6], %s117
      %s120 = sshll.u32 [#allocation9], 4
      %s121 = int_to_ptr.vmem [resolvable:$true] %s120
      %123 = dma.vmem_to_hbm [thread:$0]  %s121, 128, %s2, [#allocation6]
    $region29: #{tpu_custom_call.1} parent=1 // pred_fallthru
      _
    // Predicated region
    $region30: #{tpu_custom_call.1} parent=1 // pred_check
      _
    $region31: #{tpu_custom_call.1} parent=1 // pred_check_branch
      %125 = sbr.rel (0) target = $region33
    $region32: #{tpu_custom_call.1} parent=1 // pred_region
      %126 = dma.done [#allocation6], 128
    $region33: #{tpu_custom_call.1} parent=1 // pred_fallthru
      _
    %127 = vsyncpa [#allocation5], 1
    %128 = vsyncpa [#allocation8], 1
    %129 = vsyncpa [#allocation6], 1

</llo_original>
